<compile_context>
chip_gen: v6e
topology: v6e:2x2x1
jax: 0.10.0
libtpu: 0.0.40
codegen_flags: <defaults>
</compile_context>

<pallas_src>
import functools

import jax
import jax.numpy as jnp
from jax.experimental import pallas as pl
from jax.experimental.pallas import tpu as pltpu

HIDDEN = 256
LANE = 128


def _round_up(x, m):
    return (x + m - 1) // m * m


def fnn_kernel(x_ref, wf_ref, bf_ref, out_ref):
    """One batch tile: (TB, D_in) f32 -> (TB, N_pad) bf16."""
    x = x_ref[...].astype(jnp.bfloat16)                 # in-kernel cast (VPU)
    logits = jnp.dot(x, wf_ref[...],                    # (TB, D_in)@(D_in, N_pad)
                     preferred_element_type=jnp.float32)
    logits = logits + bf_ref[...]                       # f32 bias
    # Sigmoid in f32 (v5e EUP has no bf16 path); cast only at the store.
    out_ref[...] = jax.nn.sigmoid(logits).astype(out_ref.dtype)


@functools.partial(jax.jit, static_argnames=("tb",))
def fnn_forward(x, fused, *, tb=4096):
    """Returns the padded, lane-dense sigmoid output of shape (B, N_pad) bf16.

    The caller slices [:, :num_classes] lazily (avoids an extra HBM pass on
    the full padded buffer inside this function).
    """
    B, d_in = x.shape
    wf, bf = fused["wf"], fused["bf"]          # (D_in, N_pad) bf16, (1, N_pad) f32
    n_pad = wf.shape[1]

    # Batch tile: multiple of 8 sublanes; cap so B >= 16 gives >= 2 grid
    # steps (both v7x TensorCores busy), and never exceed the requested tb.
    tb_eff = max(8, min(tb, _round_up(pl.cdiv(B, 2), 8)))
    grid = (pl.cdiv(B, tb_eff),)               # partial last block if B % tb_eff

    const = lambda i: (0, 0)
    return pl.pallas_call(
        fnn_kernel,
        out_shape=jax.ShapeDtypeStruct((B, n_pad), jnp.bfloat16),
        grid=grid,
        in_specs=[
            pl.BlockSpec((tb_eff, d_in), lambda i: (i, 0)),   # x tile (streamed)
            pl.BlockSpec((d_in, n_pad), const),               # fused W (resident)
            pl.BlockSpec((1, n_pad), const),                  # fused b (resident)
        ],
        out_specs=pl.BlockSpec((tb_eff, n_pad), lambda i: (i, 0)),
        compiler_params=pltpu.CompilerParams(
            dimension_semantics=("parallel",),
            vmem_limit_bytes=64 << 20),        # needed on v5e for large tb
    )(x, wf, bf)


def init_params(key, input_dim, num_classes):
    """Deterministic synthetic f32 parameters matching FNN(input_dim, num_classes).

    Weights stored as (d_in, d_out) so the math is x @ W + b
    (== PyTorch's x @ weight.T + bias).
    """
    ks = jax.random.split(key, 4)

    def linear(kw, kb, d_in, d_out):
        bound = 1.0 / jnp.sqrt(jnp.float32(d_in))
        w = jax.random.uniform(kw, (d_in, d_out), jnp.float32, -bound, bound)
        b = jax.random.uniform(kb, (1, d_out), jnp.float32, -bound, bound)
        return w, b

    w1, b1 = linear(ks[0], ks[1], input_dim, HIDDEN)
    w2, b2 = linear(ks[2], ks[3], HIDDEN, num_classes)
    return {"w1": w1, "b1": b1, "w2": w2, "b2": b2}


def fuse_params(params):
    """Collapse the two bias-only linears into one affine map (done once, in f32).

    Wf = W1 @ W2  (cast to bf16 once),  bf = b1 @ W2 + b2  (kept f32).
    The class dim is padded to a multiple of 128 for a lane-dense output.
    """
    w1, b1 = params["w1"], params["b1"]
    w2, b2 = params["w2"], params["b2"]
    wf = w1 @ w2                               # (D_in, C) f32
    bf = b1 @ w2 + b2                          # (1, C)   f32
    c = wf.shape[1]
    n_pad = _round_up(c, LANE)
    if n_pad != c:
        wf = jnp.pad(wf, ((0, 0), (0, n_pad - c)))
        bf = jnp.pad(bf, ((0, 0), (0, n_pad - c)))
    return {"wf": wf.astype(jnp.bfloat16), "bf": bf}


def reference_forward(x, p):
    """Pure-JAX f32 reference matching the PyTorch module exactly."""
    h = x @ p["w1"] + p["b1"]
    return jax.nn.sigmoid(h @ p["w2"] + p["b2"])


if __name__ == "__main__":
    key = jax.random.PRNGKey(0)
    k_x, k_p, k_x2 = jax.random.split(key, 3)

    INPUT_DIM, NUM_CLASSES = 32, 4
    params = init_params(k_p, INPUT_DIM, NUM_CLASSES)
    fused = fuse_params(params)

    # Small-shape run consistent with the module spec (single grid step).
    B = 8
    x = jax.random.normal(k_x, (B, INPUT_DIM), jnp.float32)
    out_pad = jax.block_until_ready(fnn_forward(x, params=None, tb=4096, fused=fused)
                                    if False else fnn_forward(x, fused))
    assert out_pad.shape == (B, 128)
    y = out_pad[:, :NUM_CLASSES].astype(jnp.float32)      # consumer-side lazy slice
    y_ref = reference_forward(x, params)
    assert jnp.allclose(y, y_ref, atol=1e-2, rtol=1e-2)

    # Multi-tile + ragged-batch path: 3 grid steps, partial (masked) last block.
    B2 = 300
    x2 = jax.random.normal(k_x2, (B2, INPUT_DIM), jnp.float32)
    out2_pad = jax.block_until_ready(fnn_forward(x2, fused, tb=128))
    assert out2_pad.shape == (B2, 128)
    y2 = out2_pad[:, :NUM_CLASSES].astype(jnp.float32)
    y2_ref = reference_forward(x2, params)
    assert jnp.allclose(y2, y2_ref, atol=1e-2, rtol=1e-2)

    print("KERNEL_OK")
</pallas_src>

<mosaic_0001>
module attributes {stable_mosaic.version = 11 : i64} {
  func.func @fnn_kernel(%arg0: i32, %arg1: memref<8x32xf32, #tpu.memory_space<vmem>>, %arg2: memref<32x128xbf16, #tpu.memory_space<vmem>>, %arg3: memref<1x128xf32, #tpu.memory_space<vmem>>, %arg4: memref<8x128xbf16, #tpu.memory_space<vmem>>) attributes {dimension_semantics = [#tpu.dimension_semantics<parallel>], iteration_bounds = array<i64: 1>, scalar_prefetch = 0 : i64, scratch_operands = 0 : i64, tpu.core_type = #tpu.core_type<tc>, window_params = [{transform_indices = @transform_0, window_bounds = array<i64: 8, 32>}, {pipeline_mode = #tpu.pipeline_mode<synchronous>, transform_indices = @transform_1, window_bounds = array<i64: 32, 128>}, {pipeline_mode = #tpu.pipeline_mode<synchronous>, transform_indices = @transform_2, window_bounds = array<i64: 1, 128>}, {transform_indices = @transform_3, window_bounds = array<i64: 8, 128>}]} {
    %c0 = arith.constant 0 : index
    %c0_0 = arith.constant 0 : index
    %0 = vector.load %arg1[%c0, %c0_0] : memref<8x32xf32, #tpu.memory_space<vmem>>, vector<8x32xf32>
    %1 = arith.truncf %0 : vector<8x32xf32> to vector<8x32xbf16>
    %c0_1 = arith.constant 0 : index
    %c0_2 = arith.constant 0 : index
    %2 = vector.load %arg2[%c0_1, %c0_2] : memref<32x128xbf16, #tpu.memory_space<vmem>>, vector<32x128xbf16>
    %cst = arith.constant dense<0.000000e+00> : vector<8x128xf32>
    %3 = tpu.matmul %1, %2, %cst {dimension_numbers = #tpu.dot_dimension_numbers<[1], [0], [0], [1], [0, 0, 1, 1], [], []>} : vector<8x32xbf16>, vector<32x128xbf16>, vector<8x128xf32> -> vector<8x128xf32>
    %c0_3 = arith.constant 0 : index
    %c0_4 = arith.constant 0 : index
    %4 = vector.load %arg3[%c0_3, %c0_4] : memref<1x128xf32, #tpu.memory_space<vmem>>, vector<1x128xf32>
    %5 = vector.broadcast %4 : vector<1x128xf32> to vector<8x128xf32>
    %6 = arith.addf %3, %5 : vector<8x128xf32>
    %7 = arith.negf %6 : vector<8x128xf32>
    %8 = math.exp %7 : vector<8x128xf32>
    %cst_5 = arith.constant 1.000000e+00 : f32
    %9 = vector.broadcast %cst_5 : f32 to vector<8x128xf32>
    %10 = arith.addf %9, %8 : vector<8x128xf32>
    %11 = arith.divf %9, %10 : vector<8x128xf32>
    %12 = arith.truncf %11 : vector<8x128xf32> to vector<8x128xbf16>
    %c0_6 = arith.constant 0 : index
    %c0_7 = arith.constant 0 : index
    %13 = vector.load %arg4[%c0_6, %c0_7] : memref<8x128xbf16, #tpu.memory_space<vmem>>, vector<8x128xbf16>
    tpu.vector_store %arg4[%c0_6, %c0_7], %12 {strides = array<i32>} : memref<8x128xbf16, #tpu.memory_space<vmem>>, vector<8x128xbf16>,
    return
  }
  func.func @transform_0(%arg0: i32) -> (i32, i32) {
    %c0_i32 = arith.constant 0 : i32
    %c0_i32_0 = arith.constant 0 : i32
    return %arg0, %c0_i32 : i32, i32
  }
  func.func @transform_1(%arg0: i32) -> (i32, i32) {
    %c0_i32 = arith.constant 0 : i32
    %c0_i32_0 = arith.constant 0 : i32
    %c0_i32_1 = arith.constant 0 : i32
    return %c0_i32, %c0_i32_0 : i32, i32
  }
  func.func @transform_2(%arg0: i32) -> (i32, i32) {
    %c0_i32 = arith.constant 0 : i32
    %c0_i32_0 = arith.constant 0 : i32
    %c0_i32_1 = arith.constant 0 : i32
    return %c0_i32, %c0_i32_0 : i32, i32
  }
  func.func @transform_3(%arg0: i32) -> (i32, i32) {
    %c0_i32 = arith.constant 0 : i32
    %c0_i32_0 = arith.constant 0 : i32
    return %arg0, %c0_i32 : i32, i32
  }
}

</mosaic_0001>

<llo_original>
// kernel: fnn_forward.1
$region0: #{fnn_forward.1}
  #allocation0 [shape = 'u32[]', space=smem, size = 0x4, offset = 0x4, fixed_abs, tag = 'smem constant byte address 0x4 - core index']
  #allocation1 [shape = 'u32[144,128]{1,0:T(1,128)}', space=vmem, size = 0x12000, scoped, tag = 'internal scratch']
  %s0 = inlined_call_operand.hbm [shape: f32[8,32], index: 0, kind: input, shape index: {}]
  %s1 = inlined_call_operand.hbm [shape: bf16[32,128], index: 1, kind: input, shape index: {}]
  %s2 = inlined_call_operand.vmem [shape: f32[1,128], index: 2, kind: input, shape index: {}]
  %s3 = inlined_call_operand.hbm [shape: bf16[8,128], index: 3, kind: output, shape index: {}]
  %s4 = sld [smem:[#allocation0]]
  $region30: #{fnn_forward.1} parent=0
    _
  %s6 = ssub.s32 1, %s4
  %s7 = scalar_select 0, %s6, %s4
  $region1: #{fnn_forward.1} parent=0
    #allocation2 [shape = 'u8[4096]{0}', space=vmem, size = 0x1000, scoped, tag = 'input window, operand 0, single buffered']
    #allocation3 [shape = 's32[1]{0}', space=sflag, size = 0x4, scoped, tag = 'scoped memory for fnn_forward.1']
    #allocation4 [shape = 's32[1]{0}', space=sflag, size = 0x4, scoped, tag = 'scoped memory for fnn_forward.1']
    #allocation5 [shape = 'u8[8192]{0}', space=vmem, size = 0x2000, scoped, tag = 'input window, operand 1, single buffered']
    #allocation6 [shape = 's32[1]{0}', space=sflag, size = 0x4, scoped, tag = 'scoped memory for fnn_forward.1']
    #allocation7 [shape = 'u8[2048]{0}', space=vmem, size = 0x800, scoped, tag = 'output window, operand 0, single buffered']
    %8 = vsyncpa [#allocation3], 0
    %9 = vsyncpa [#allocation6], 0
    %10 = vsyncpa [#allocation4], 0
    // Predicated region
    $region2: #{fnn_forward.1} parent=1 // pred_check
      _
    $region3: #{fnn_forward.1} parent=1 // pred_check_branch
      %12 = sbr.rel (0) target = $region5
    $region4: #{fnn_forward.1} parent=1 // pred_region
      %s14 = ssub.s32 128, 128
      %15 = vsyncadd [#allocation3], %s14
      %s17 = sshll.u32 [#allocation2], 4
      %s18 = int_to_ptr.vmem [resolvable:$true] %s17
      %20 = dma.hbm_to_vmem [thread:$0]  %s0, 128, %s18, [#allocation3]
    $region5: #{fnn_forward.1} parent=1 // pred_fallthru
      _
    // Predicated region
    $region6: #{fnn_forward.1} parent=1 // pred_check
      _
    $region7: #{fnn_forward.1} parent=1 // pred_check_branch
      %22 = sbr.rel (0) target = $region9
    $region8: #{fnn_forward.1} parent=1 // pred_region
      %s24 = ssub.s32 256, 256
      %25 = vsyncadd [#allocation6], %s24
      %s26 = sshll.u32 [#allocation5], 4
      %s27 = int_to_ptr.vmem [resolvable:$true] %s26
      %32 = dma.hbm_to_vmem [thread:$0]  %s1, 256, %s27, [#allocation6], 64, 64, 4
    $region9: #{fnn_forward.1} parent=1 // pred_fallthru
      _
    // Predicated region
    $region10: #{fnn_forward.1} parent=1 // pred_check
      _
    $region11: #{fnn_forward.1} parent=1 // pred_check_branch
      %34 = sbr.rel (0) target = $region13
    $region12: #{fnn_forward.1} parent=1 // pred_region
      _
    $region13: #{fnn_forward.1} parent=1 // pred_fallthru
      _
    // Predicated region
    $region14: #{fnn_forward.1} parent=1 // pred_check
      _
    $region15: #{fnn_forward.1} parent=1 // pred_check_branch
      %36 = sbr.rel (0) target = $region17
    $region16: #{fnn_forward.1} parent=1 // pred_region
      %37 = dma.done [#allocation3], 128
    $region17: #{fnn_forward.1} parent=1 // pred_fallthru
      _
    // Predicated region
    $region18: #{fnn_forward.1} parent=1 // pred_check
      _
    $region19: #{fnn_forward.1} parent=1 // pred_check_branch
      %39 = sbr.rel (0) target = $region21
    $region20: #{fnn_forward.1} parent=1 // pred_region
      %40 = dma.done [#allocation6], 256
    $region21: #{fnn_forward.1} parent=1 // pred_fallthru
      _
    %v42 = vld [vmem:[#allocation2] sm:$0xff]
    %v43 = vpack.c.bf16 %v42, %v42
    %v44 = vld [vmem:[#allocation5] sm:$0xf]
    %v45 = vld [vmem:[#allocation5 + $0x4] sm:$0xf]
    %v46 = vld [vmem:[#allocation5 + $0x8] sm:$0xf]
    %v47 = vld [vmem:[#allocation5 + $0xc] sm:$0xf]
    %v48 = vld [vmem:[%s2] sm:$0x1]
    %v50 = vlaneseq
    %v51 = vshrl.u32 %v50, 7
    %v52 = vsub.s32 0, %v51
    %v53 = vrot.slane %v48, %v52
    %v59 = vunpack.c.l.b16 %v44
    %v60 = vunpack.c.l.b16 %v45
    %v61 = vunpack.c.l.b16 %v46
    %v62 = vunpack.c.l.b16 %v47
    %v63 = vpack.c.b16 %v60, %v59
    %v64 = vpack.c.b16 %v62, %v61
    %vm67 = vcmask 261120
    %v69 = vsel %vm67, %v43, 0
    %71 = vmatprep.subr.bf16.mxu0 0
    %72 = vmatpush1.bf16.msra.mxu0 0
    %73 = vmatprep.subr.bf16.mxu0 0
    %74 = vmatpush1.bf16.msra.mxu0 0
    %75 = vmatprep.subr.bf16.mxu0 0
    %76 = vmatpush1.bf16.msra.mxu0 0
    %77 = vmatprep.subr.bf16.mxu0 0
    %78 = vmatpush1.bf16.msra.mxu0 0
    %79 = vmatprep.subr.bf16.mxu0 0
    %80 = vmatpush1.bf16.msra.mxu0 0
    %81 = vmatprep.subr.bf16.mxu0 0
    %82 = vmatpush1.bf16.msra.mxu0 0
    %83 = vmatprep.subr.bf16.mxu0 0
    %84 = vmatpush1.bf16.msra.mxu0 %v64
    %85 = vmatprep.subr.bf16.mxu0 0
    %86 = vmatpush1.bf16.msra.mxu0 %v63
    %87 = vmatprep.subr.bf16.mxu0 0
    %88 = vmatpush2.bf16.msra.mxu0 0
    %89 = vmatprep.subr.bf16.mxu0 0
    %90 = vmatpush2.bf16.msra.mxu0 0
    %91 = vmatprep.subr.bf16.mxu0 0
    %92 = vmatpush2.bf16.msra.mxu0 0
    %93 = vmatprep.subr.bf16.mxu0 0
    %94 = vmatpush2.bf16.msra.mxu0 0
    %95 = vmatprep.subr.bf16.mxu0 0
    %96 = vmatpush2.bf16.msra.mxu0 0
    %97 = vmatprep.subr.bf16.mxu0 0
    %98 = vmatpush2.bf16.msra.mxu0 0
    %99 = vmatprep.subr.bf16.mxu0 0
    %100 = vmatpush2.bf16.msra.mxu0 0
    %101 = vmatprep.subr.bf16.mxu0 0
    %102 = vmatpush2.bf16.msra.mxu0 0
    %103 = vmatprep.mubr.bf16.mxu0 0
    %104 = vmatmul.mubr.bf16.gmra.mxu0 %v69
    %v105 = vpop.f32.mrf.mxu0
    %v106 = vadd.f32 %v53, %v105
    %v107 = vpop.f32.mrf.mxu0
    %v108 = vpop.f32.mrf.mxu0
    %v109 = vpop.f32.mrf.mxu0
    %110 = vdwg.mxu0
    %v111 = vxor.u32 %v106, 2147483648
    %v112 = vmul.f32 %v111, 1.442695
    %v113 = vpow.pop %v112
    %v114 = vadd.f32 %v113, 1.0
    %v115 = vrcp.pop %v114
    %v116 = vmul.f32 1.0, %v115
    %v117 = vpack.c.bf16 %v116, %v116
    %118 = vst [vmem:[#allocation7] sm:$0xf] %v117
    // Predicated region
    $region22: #{fnn_forward.1} parent=1 // pred_check
      _
    $region23: #{fnn_forward.1} parent=1 // pred_check_branch
      %120 = sbr.rel (0) target = $region25
    $region24: #{fnn_forward.1} parent=1 // pred_region
      %s122 = ssub.s32 64, 64
      %123 = vsyncadd [#allocation4], %s122
      %s125 = sshll.u32 [#allocation7], 4
      %s126 = int_to_ptr.vmem [resolvable:$true] %s125
      %128 = dma.vmem_to_hbm [thread:$0]  %s126, 64, %s3, [#allocation4]
    $region25: #{fnn_forward.1} parent=1 // pred_fallthru
      _
    // Predicated region
    $region26: #{fnn_forward.1} parent=1 // pred_check
      _
    $region27: #{fnn_forward.1} parent=1 // pred_check_branch
      %130 = sbr.rel (0) target = $region29
    $region28: #{fnn_forward.1} parent=1 // pred_region
      %131 = dma.done [#allocation4], 64
    $region29: #{fnn_forward.1} parent=1 // pred_fallthru
      _
    %132 = vsyncpa [#allocation3], 1
    %133 = vsyncpa [#allocation6], 1
    %134 = vsyncpa [#allocation4], 1

</llo_original>
